<compile_context>
chip_gen: v6e
topology: v6e:2x2x1
jax: 0.10.0
libtpu: 0.0.40
codegen_flags: <defaults>
</compile_context>

<pallas_src>
import jax
import jax.numpy as jnp
from jax.experimental import pallas as pl
from jax.experimental.pallas import tpu as pltpu


def _copy_kernel(x_ref, o_ref):
    # Pure DMA-through: identical block shapes on both sides, no reshape,
    # no VPU/XLU work inside the kernel.
    o_ref[...] = x_ref[...]


def _choose_tiles(B: int, flat: int, dtype_bytes: int):
    """Jointly pick (tb, tf) so each block is ~2 MiB, lane/sublane aligned."""
    # Sublane packing factor: 8 for 4-byte, 16 for 2-byte, 32 for 1-byte dtypes.
    sub = 8 * max(1, 4 // max(1, dtype_bytes))
    # ~2 MiB per block -> 4 double-buffered in+out blocks <= ~8 MiB VMEM,
    # safe under every generation's scoped-VMEM default.
    budget_bytes = 2 * 1024 * 1024
    budget_elems = max(sub * 128, budget_bytes // dtype_bytes)

    if flat * sub <= budget_elems:
        # Whole flat rows fit comfortably: tf spans the full flat extent
        # (legal even when not a multiple of 128 because it equals the array
        # dim) and tb grows, sublane-aligned, to fill the block budget.
        tf = flat
        tb = min(B, max(sub, ((budget_elems // max(flat, 1)) // sub) * sub))
    else:
        # A single flat row already fills the budget: minimal sublane-aligned
        # batch tile + lane-dense (multiple-of-128) flat tile; ragged tail
        # handled by the cdiv grid (Pallas masks the partial block).
        tb = min(B, sub)
        tf = max(128, ((budget_elems // max(tb, 1)) // 128) * 128)
        tf = min(tf, flat)

    # v7x has 2 TensorCores: for non-tiny inputs make sure at least 2 parallel
    # blocks exist so both cores share the copy (harmless on v5e/v6e).
    if pl.cdiv(B, tb) * pl.cdiv(flat, tf) == 1 and B * flat * dtype_bytes >= 512 * 1024:
        if tb >= 2 * sub:
            tb = ((tb // 2 + sub - 1) // sub) * sub
        elif flat >= 256:
            half = (((flat + 1) // 2 + 127) // 128) * 128
            if half < flat:
                tf = half
    return tb, tf


def flatten_layer(x: jax.Array) -> jax.Array:
    """Pallas equivalent of torch `x.view(x.size(0), -1)` for N-D input."""
    B = x.shape[0]
    flat = 1
    for d in x.shape[1:]:
        flat *= d

    # Free metadata-only reshape in the wrapper (zero bytes moved by XLA).
    x2 = jnp.reshape(x, (B, flat))

    dtype_bytes = jnp.dtype(x.dtype).itemsize
    tb, tf = _choose_tiles(B, flat, dtype_bytes)
    grid = (pl.cdiv(B, tb), pl.cdiv(flat, tf))

    return pl.pallas_call(
        _copy_kernel,
        out_shape=jax.ShapeDtypeStruct((B, flat), x.dtype),
        grid_spec=pltpu.PrefetchScalarGridSpec(
            num_scalar_prefetch=0,
            grid=grid,
            in_specs=[pl.BlockSpec((tb, tf), lambda i, j: (i, j))],
            out_specs=pl.BlockSpec((tb, tf), lambda i, j: (i, j)),
        ),
        # Donate the (B, flat) input buffer as the output: in-place view
        # semantics, no second HBM allocation when the input is donatable.
        input_output_aliases={0: 0},
        compiler_params=pltpu.CompilerParams(
            # Both axes independent -> shard across v7x's 2 TensorCores;
            # no-op on single-TC v5e/v6e.
            dimension_semantics=("parallel", "parallel"),
        ),
    )(x2)


if __name__ == "__main__":
    key = jax.random.PRNGKey(0)
    # Small YOLO-style feature map: B=2, C=4, H=W=16  ->  flat = 1024 lanes
    x = jax.random.normal(key, (2, 4, 16, 16), dtype=jnp.float32)

    # Reference of torch's view(B, -1), computed up front.
    ref = x.reshape(x.shape[0], -1)

    out = flatten_layer(x)
    out = jax.block_until_ready(out)

    assert out.shape == (2, 4 * 16 * 16), out.shape
    assert out.dtype == x.dtype
    assert jnp.array_equal(out, ref), "mismatch vs reference flatten"

    print("KERNEL_OK")
</pallas_src>

<mosaic_0001>
module attributes {stable_mosaic.version = 11 : i64} {
  func.func @_copy_kernel(%arg0: i32, %arg1: i32, %arg2: memref<2x1024xf32, #tpu.memory_space<vmem>>, %arg3: memref<2x1024xf32, #tpu.memory_space<vmem>>) attributes {dimension_semantics = [#tpu.dimension_semantics<parallel>, #tpu.dimension_semantics<parallel>], iteration_bounds = array<i64: 1, 1>, scalar_prefetch = 0 : i64, scratch_operands = 0 : i64, tpu.core_type = #tpu.core_type<tc>, window_params = [{transform_indices = @transform_0, window_bounds = array<i64: 2, 1024>}, {transform_indices = @transform_1, window_bounds = array<i64: 2, 1024>}]} {
    %c0 = arith.constant 0 : index
    %c0_0 = arith.constant 0 : index
    %0 = vector.load %arg2[%c0, %c0_0] : memref<2x1024xf32, #tpu.memory_space<vmem>>, vector<2x1024xf32>
    %c0_1 = arith.constant 0 : index
    %c0_2 = arith.constant 0 : index
    %1 = vector.load %arg3[%c0_1, %c0_2] : memref<2x1024xf32, #tpu.memory_space<vmem>>, vector<2x1024xf32>
    tpu.vector_store %arg3[%c0_1, %c0_2], %0 {strides = array<i32>} : memref<2x1024xf32, #tpu.memory_space<vmem>>, vector<2x1024xf32>,
    return
  }
  func.func @transform_0(%arg0: i32, %arg1: i32) -> (i32, i32) {
    %c0_i32 = arith.constant 0 : i32
    return %arg0, %arg1 : i32, i32
  }
  func.func @transform_1(%arg0: i32, %arg1: i32) -> (i32, i32) {
    %c0_i32 = arith.constant 0 : i32
    return %arg0, %arg1 : i32, i32
  }
}

</mosaic_0001>

<llo_original>
// kernel: tpu_custom_call.1
$region0: #{tpu_custom_call.1}
  #allocation0 [shape = 'u32[]', space=smem, size = 0x4, offset = 0x4, fixed_abs, tag = 'smem constant byte address 0x4 - core index']
  #allocation1 [shape = 'u32[144,128]{1,0:T(1,128)}', space=vmem, size = 0x12000, scoped, tag = 'internal scratch']
  %s0 = inlined_call_operand.hbm [shape: f32[2,1024], index: 0, kind: input, shape index: {}, may-alias: {0,1}]
  %s1 = inlined_call_operand.hbm [shape: f32[2,1024], index: 1, kind: output, shape index: {}, may-alias: {0,1}]
  %s2 = sld [smem:[#allocation0]]
  $region18: #{tpu_custom_call.1} parent=0
    _
  %s4 = ssub.s32 1, %s2
  %s5 = scalar_select 0, %s4, %s2
  $region1: #{tpu_custom_call.1} parent=0
    #allocation2 [shape = 'u8[8192]{0}', space=vmem, size = 0x2000, scoped, tag = 'input window, operand 0, single buffered']
    #allocation3 [shape = 's32[1]{0}', space=sflag, size = 0x4, scoped, tag = 'scoped memory for tpu_custom_call.1']
    #allocation4 [shape = 's32[1]{0}', space=sflag, size = 0x4, scoped, tag = 'scoped memory for tpu_custom_call.1']
    #allocation5 [shape = 'u8[8192]{0}', space=vmem, size = 0x2000, scoped, tag = 'output window, operand 0, single buffered']
    %6 = vsyncpa [#allocation3], 0
    %7 = vsyncpa [#allocation4], 0
    // Predicated region
    $region2: #{tpu_custom_call.1} parent=1 // pred_check
      _
    $region3: #{tpu_custom_call.1} parent=1 // pred_check_branch
      %9 = sbr.rel (0) target = $region5
    $region4: #{tpu_custom_call.1} parent=1 // pred_region
      %s11 = ssub.s32 256, 256
      %12 = vsyncadd [#allocation3], %s11
      %s14 = sshll.u32 [#allocation2], 4
      %s15 = int_to_ptr.vmem [resolvable:$true] %s14
      %17 = dma.hbm_to_vmem [thread:$0]  %s0, 256, %s15, [#allocation3]
    $region5: #{tpu_custom_call.1} parent=1 // pred_fallthru
      _
    // Predicated region
    $region6: #{tpu_custom_call.1} parent=1 // pred_check
      _
    $region7: #{tpu_custom_call.1} parent=1 // pred_check_branch
      %19 = sbr.rel (0) target = $region9
    $region8: #{tpu_custom_call.1} parent=1 // pred_region
      %20 = dma.done [#allocation3], 256
    $region9: #{tpu_custom_call.1} parent=1 // pred_fallthru
      _
    %v21 = vld [vmem:[#allocation2] sm:$0xff]
    %v22 = vld [vmem:[#allocation2 + $0x8] sm:$0xff]
    %23 = vst [vmem:[#allocation5] sm:$0xff] %v21
    %24 = vst [vmem:[#allocation5 + $0x8] sm:$0xff] %v22
    // Predicated region
    $region10: #{tpu_custom_call.1} parent=1 // pred_check
      _
    $region11: #{tpu_custom_call.1} parent=1 // pred_check_branch
      %26 = sbr.rel (0) target = $region13
    $region12: #{tpu_custom_call.1} parent=1 // pred_region
      %s28 = ssub.s32 256, 256
      %29 = vsyncadd [#allocation4], %s28
      %s31 = sshll.u32 [#allocation5], 4
      %s32 = int_to_ptr.vmem [resolvable:$true] %s31
      %34 = dma.vmem_to_hbm [thread:$0]  %s32, 256, %s1, [#allocation4]
    $region13: #{tpu_custom_call.1} parent=1 // pred_fallthru
      _
    // Predicated region
    $region14: #{tpu_custom_call.1} parent=1 // pred_check
      _
    $region15: #{tpu_custom_call.1} parent=1 // pred_check_branch
      %36 = sbr.rel (0) target = $region17
    $region16: #{tpu_custom_call.1} parent=1 // pred_region
      %37 = dma.done [#allocation4], 256
    $region17: #{tpu_custom_call.1} parent=1 // pred_fallthru
      _
    %38 = vsyncpa [#allocation3], 1
    %39 = vsyncpa [#allocation4], 1

</llo_original>
